<compile_context>
chip_gen: v7x
topology: tpu7x:2x2x1
jax: 0.10.0
libtpu: 0.0.40
codegen_flags: <defaults>
</compile_context>

<pallas_src>
import functools

import jax
import jax.numpy as jnp
from jax.experimental import pallas as pl
from jax.experimental.pallas import tpu as pltpu


def _round_up(x, m):
    return (x + m - 1) // m * m


def _vmem_capacity_bytes():
    try:
        return int(pltpu.get_tpu_info().vmem_capacity_bytes)
    except Exception:
        return 64 * 1024 * 1024  # conservative default: v7x per-TensorCore VMEM


def patch_embed_kernel(p_ref, w_ref, b_ref, o_ref):
    # p_ref: (tm, K)  patch rows (compute dtype) — VMEM-resident across hidden tiles
    # w_ref: (K, tn)  weight slab (compute dtype)
    # b_ref: (1, tn)  f32 bias row
    # o_ref: (tm, tn) output tile
    acc = jnp.dot(p_ref[...], w_ref[...],
                  preferred_element_type=jnp.float32)   # MXU, f32 accumulate
    o_ref[...] = (acc + b_ref[...]).astype(o_ref.dtype)


@functools.partial(jax.jit, static_argnames=("patch_size", "compute_dtype"))
def patch_embeddings(x, weight, bias, *, patch_size, compute_dtype=jnp.bfloat16):
    """x: (B, C, H, W) NCHW.  weight: (hidden, C, P, P) (PyTorch Conv2d layout).
    bias: (hidden,).  Returns (B, N, hidden), N = (H/P)*(W/P) — equivalent to
    Conv2d(C, hidden, P, stride=P)(x).flatten(2).transpose(1, 2)."""
    B, C, H, W = x.shape
    hidden = weight.shape[0]
    P = patch_size
    nh, nw = H // P, W // P
    N = nh * nw
    K = C * P * P
    M = B * N
    out_dtype = x.dtype
    cdt = jnp.dtype(compute_dtype)
    out_b = jnp.dtype(out_dtype).itemsize

    # ---- layout glue: im2col in (C, kh, kw) order + compute-dtype cast ------
    # (B,C,nh,P,nw,P) -> (B,nh,nw,C,P,P) -> (M,K). Only the transpose should
    # materialize; the cast is allowed to fuse into the pallas operand.
    patches = x.reshape(B, C, nh, P, nw, P).transpose(0, 2, 4, 1, 3, 5)
    patches = patches.reshape(M, K).astype(cdt)
    w_flat = weight.reshape(hidden, K).T.astype(cdt)       # (K, hidden), (C,kh,kw) order
    b_row = bias.reshape(1, hidden).astype(jnp.float32)    # (1, hidden)

    # ---- tile sizes derived from the chip's VMEM; no array padding ----------
    vmem_cap = _vmem_capacity_bytes()
    budget = vmem_cap // 2                    # leave half for compiler scratch
    tm = min(1024 if vmem_cap >= 100 * 2**20 else 512, _round_up(M, 16))

    def bufs_bytes(tn):                       # double-buffered working set
        return 2 * (tm * K * cdt.itemsize          # patch tile
                    + K * tn * cdt.itemsize        # weight slab
                    + 8 * _round_up(tn, 128) * 4   # bias row (tile-padded)
                    + tm * tn * out_b)             # output tile

    if bufs_bytes(hidden) <= budget:
        tn = hidden            # whole weight slab VMEM-resident -> 1-D row grid
    else:
        tn = 512               # huge-hidden fallback, lane-dense (multiple of 128)

    grid_m = pl.cdiv(M, tm)
    grid_n = pl.cdiv(hidden, tn)
    vmem_limit = int(min(max(int(1.5 * bufs_bytes(tn)), 16 * 2**20),
                         int(0.75 * vmem_cap)))

    cost = pl.CostEstimate(
        flops=2 * M * K * hidden,
        transcendentals=0,
        bytes_accessed=(M * K * cdt.itemsize                 # patches read once
                        + K * hidden * cdt.itemsize * (grid_m if grid_n > 1 else 1)
                        + hidden * 4
                        + M * hidden * out_b),
    )

    out = pl.pallas_call(
        patch_embed_kernel,
        out_shape=jax.ShapeDtypeStruct((M, hidden), out_dtype),
        grid_spec=pl.GridSpec(
            # Rows outer ("parallel": megacore shards rows across TensorCores),
            # hidden inner ("arbitrary"): patch tile read from HBM exactly once.
            grid=(grid_m, grid_n),
            in_specs=[
                pl.BlockSpec((tm, K), lambda m, n: (m, 0)),   # patches (resident over n)
                pl.BlockSpec((K, tn), lambda m, n: (0, n)),   # weight
                pl.BlockSpec((1, tn), lambda m, n: (0, n)),   # bias
            ],
            out_specs=pl.BlockSpec((tm, tn), lambda m, n: (m, n)),
        ),
        compiler_params=pltpu.CompilerParams(
            dimension_semantics=("parallel", "arbitrary"),
            vmem_limit_bytes=vmem_limit,
            allow_input_fusion=[True, False, False],
        ),
        cost_estimate=cost,
    )(patches, w_flat, b_row)

    return out.reshape(B, N, hidden)


if __name__ == "__main__":
    # Small shapes consistent with the module:
    #   input_resolution=16, patch_size=4, hidden_size=32, in_channels=4, batch=2
    B, C, HW, P, HIDDEN = 2, 4, 16, 4, 32

    key = jax.random.PRNGKey(0)
    kx, kw, kb = jax.random.split(key, 3)
    x = jax.random.normal(kx, (B, C, HW, HW), dtype=jnp.float32)
    # Deterministic parameters (same shapes as nn.Conv2d(C, HIDDEN, P, stride=P))
    weight = jax.random.normal(kw, (HIDDEN, C, P, P), dtype=jnp.float32) * 0.02
    bias = jax.random.normal(kb, (HIDDEN,), dtype=jnp.float32) * 0.02

    out = jax.block_until_ready(patch_embeddings(x, weight, bias, patch_size=P))

    # Reference: strided conv, then flatten(2).transpose(1, 2)
    ref = jax.lax.conv_general_dilated(
        x, weight, window_strides=(P, P), padding="VALID",
        dimension_numbers=("NCHW", "OIHW", "NCHW"))
    ref = (ref + bias[None, :, None, None]).reshape(B, HIDDEN, -1)
    ref = jnp.transpose(ref, (0, 2, 1))   # (B, N, hidden)

    assert out.shape == (B, (HW // P) * (HW // P), HIDDEN), out.shape
    # bf16 MXU operands (f32 accumulation) vs f32 reference -> loose tolerance.
    err = float(jnp.max(jnp.abs(out.astype(jnp.float32) - ref)))
    assert jnp.allclose(out.astype(jnp.float32), ref, atol=2e-2, rtol=2e-2), \
        f"max abs diff {err}"
    print("KERNEL_OK")
</pallas_src>

<mosaic_0001>
module attributes {stable_mosaic.version = 11 : i64} {
  func.func @patch_embed_kernel(%arg0: i32, %arg1: i32, %arg2: memref<32x64xbf16, #tpu.memory_space<vmem>>, %arg3: memref<64x32xbf16, #tpu.memory_space<vmem>>, %arg4: memref<1x32xf32, #tpu.memory_space<vmem>>, %arg5: memref<32x32xf32, #tpu.memory_space<vmem>>) attributes {dimension_semantics = [#tpu.dimension_semantics<parallel>, #tpu.dimension_semantics<arbitrary>], iteration_bounds = array<i64: 1, 1>, scalar_prefetch = 0 : i64, scratch_operands = 0 : i64, tpu.core_type = #tpu.core_type<tc>, window_params = [{transform_indices = @transform_0, window_bounds = array<i64: 32, 64>}, {transform_indices = @transform_1, window_bounds = array<i64: 64, 32>}, {transform_indices = @transform_2, window_bounds = array<i64: 1, 32>}, {transform_indices = @transform_3, window_bounds = array<i64: 32, 32>}]} {
    %c0 = arith.constant 0 : index
    %c0_0 = arith.constant 0 : index
    %0 = vector.load %arg2[%c0, %c0_0] : memref<32x64xbf16, #tpu.memory_space<vmem>>, vector<32x64xbf16>
    %c0_1 = arith.constant 0 : index
    %c0_2 = arith.constant 0 : index
    %1 = vector.load %arg3[%c0_1, %c0_2] : memref<64x32xbf16, #tpu.memory_space<vmem>>, vector<64x32xbf16>
    %cst = arith.constant dense<0.000000e+00> : vector<32x32xf32>
    %2 = tpu.matmul %0, %1, %cst {dimension_numbers = #tpu.dot_dimension_numbers<[1], [0], [0], [1], [0, 0, 1, 1], [], []>} : vector<32x64xbf16>, vector<64x32xbf16>, vector<32x32xf32> -> vector<32x32xf32>
    %c0_3 = arith.constant 0 : index
    %c0_4 = arith.constant 0 : index
    %3 = vector.load %arg4[%c0_3, %c0_4] : memref<1x32xf32, #tpu.memory_space<vmem>>, vector<1x32xf32>
    %4 = vector.broadcast %3 : vector<1x32xf32> to vector<32x32xf32>
    %5 = arith.addf %2, %4 : vector<32x32xf32>
    %c0_5 = arith.constant 0 : index
    %c0_6 = arith.constant 0 : index
    %6 = vector.load %arg5[%c0_5, %c0_6] : memref<32x32xf32, #tpu.memory_space<vmem>>, vector<32x32xf32>
    tpu.vector_store %arg5[%c0_5, %c0_6], %5 {strides = array<i32>} : memref<32x32xf32, #tpu.memory_space<vmem>>, vector<32x32xf32>,
    return
  }
  func.func @transform_0(%arg0: i32, %arg1: i32) -> (i32, i32) {
    %c0_i32 = arith.constant 0 : i32
    %c0_i32_0 = arith.constant 0 : i32
    return %arg0, %c0_i32 : i32, i32
  }
  func.func @transform_1(%arg0: i32, %arg1: i32) -> (i32, i32) {
    %c0_i32 = arith.constant 0 : i32
    %c0_i32_0 = arith.constant 0 : i32
    return %c0_i32, %arg1 : i32, i32
  }
  func.func @transform_2(%arg0: i32, %arg1: i32) -> (i32, i32) {
    %c0_i32 = arith.constant 0 : i32
    %c0_i32_0 = arith.constant 0 : i32
    return %c0_i32, %arg1 : i32, i32
  }
  func.func @transform_3(%arg0: i32, %arg1: i32) -> (i32, i32) {
    %c0_i32 = arith.constant 0 : i32
    return %arg0, %arg1 : i32, i32
  }
}

</mosaic_0001>

<llo_original>
// kernel: patch_embeddings.1
$region0: #{patch_embeddings.1}
  #allocation0 [shape = 'u32[]', space=smem, size = 0x4, offset = 0x4, fixed_abs, tag = 'smem constant byte address 0x4 - core index']
  #allocation1 [shape = 'u32[144,128]{1,0:T(1,128)}', space=vmem, size = 0x12000, scoped, tag = 'internal scratch']
  %s0 = inlined_call_operand.vmem [shape: bf16[32,64], index: 0, kind: input, shape index: {}]
  %s1 = inlined_call_operand.vmem [shape: bf16[64,32], index: 1, kind: input, shape index: {}]
  %s2 = inlined_call_operand.vmem [shape: f32[1,32], index: 2, kind: input, shape index: {}]
  %s3 = inlined_call_operand.hbm [shape: f32[32,32], index: 3, kind: output, shape index: {}]
  %s4 = sld [smem:[#allocation0]]
  $region22: #{patch_embeddings.1} parent=0
    _
  %s6 = ssub.s32 1, %s4
  %s7 = scalar_select 0, %s6, %s4
  $region1: #{patch_embeddings.1} parent=0
    #allocation2 [shape = 'u8[16384]{0}', space=vmem, size = 0x4000, scoped, tag = 'output window, operand 0, single buffered']
    #allocation3 [shape = 's32[1]{0}', space=sflag, size = 0x4, scoped, tag = 'scoped memory for patch_embeddings.1']
    %8 = vsyncpa [#allocation3], 0
    // Predicated region
    $region2: #{patch_embeddings.1} parent=1 // pred_check
      _
    $region3: #{patch_embeddings.1} parent=1 // pred_check_branch
      %10 = sbr.rel (0) target = $region5
    $region4: #{patch_embeddings.1} parent=1 // pred_region
      _
    $region5: #{patch_embeddings.1} parent=1 // pred_fallthru
      _
    // Predicated region
    $region6: #{patch_embeddings.1} parent=1 // pred_check
      _
    $region7: #{patch_embeddings.1} parent=1 // pred_check_branch
      %12 = sbr.rel (0) target = $region9
    $region8: #{patch_embeddings.1} parent=1 // pred_region
      _
    $region9: #{patch_embeddings.1} parent=1 // pred_fallthru
      _
    // Predicated region
    $region10: #{patch_embeddings.1} parent=1 // pred_check
      _
    $region11: #{patch_embeddings.1} parent=1 // pred_check_branch
      %14 = sbr.rel (0) target = $region13
    $region12: #{patch_embeddings.1} parent=1 // pred_region
      _
    $region13: #{patch_embeddings.1} parent=1 // pred_fallthru
      _
    %v16 = vld [vmem:[%s0] sm:$0xf]
    %v17 = vld [vmem:[%s0 + $0x4] sm:$0xf]
    %v18 = vld [vmem:[%s0 + $0x8] sm:$0xf]
    %v19 = vld [vmem:[%s0 + $0xc] sm:$0xf]
    %v20 = vld [vmem:[%s1] sm:$0xf]
    %v21 = vld [vmem:[%s1 + $0x4] sm:$0xf]
    %v22 = vld [vmem:[%s1 + $0x8] sm:$0xf]
    %v23 = vld [vmem:[%s1 + $0xc] sm:$0xf]
    %v24 = vld [vmem:[%s1 + $0x10] sm:$0xf]
    %v25 = vld [vmem:[%s1 + $0x14] sm:$0xf]
    %v26 = vld [vmem:[%s1 + $0x18] sm:$0xf]
    %v27 = vld [vmem:[%s1 + $0x1c] sm:$0xf]
    %v28 = vld [vmem:[%s2] sm:$0x1]
    %v30 = vlaneseq
    %v31 = vshrl.u32 %v30, 7
    %v32 = vsub.s32 0, %v31
    %v33 = vrot.slane %v28, %v32
    %v39 = vunpack.c.l.b16 %v16
    %v40 = vunpack.c.l.b16 %v17
    %v41 = vunpack.c.l.b16 %v18
    %v42 = vunpack.c.l.b16 %v19
    %v43 = vpack.c.b16 %v40, %v39
    %v44 = vpack.c.b16 %v42, %v41
    %v53 = vunpack.c.l.b16 %v20
    %v54 = vunpack.c.l.b16 %v21
    %v55 = vunpack.c.l.b16 %v22
    %v56 = vunpack.c.l.b16 %v23
    %v57 = vunpack.c.l.b16 %v24
    %v58 = vunpack.c.l.b16 %v25
    %v59 = vunpack.c.l.b16 %v26
    %v60 = vunpack.c.l.b16 %v27
    %v61 = vpack.c.b16 %v54, %v53
    %v62 = vpack.c.b16 %v56, %v55
    %v63 = vpack.c.b16 %v58, %v57
    %v64 = vpack.c.b16 %v60, %v59
    %vm69 = vcmask 523264
    %v71 = vsel %vm69, %v43, 0
    %v74 = vsel %vm69, %v44, 0
    %76 = vmatprep.subr.bf16.mxu0 0
    %77 = vmatpush1.bf16.msra.mxu0 %v61
    %78 = vmatprep.subr.bf16.mxu0 0
    %79 = vmatpush1.bf16.msra.mxu0 %v62
    %80 = vmatprep.subr.bf16.mxu0 0
    %81 = vmatpush1.bf16.msra.mxu0 %v63
    %82 = vmatprep.subr.bf16.mxu0 0
    %83 = vmatpush1.bf16.msra.mxu0 %v64
    %84 = vmatprep.subr.bf16.mxu0 0
    %85 = vmatpush1.bf16.msra.mxu0 0
    %86 = vmatprep.subr.bf16.mxu0 0
    %87 = vmatpush1.bf16.msra.mxu0 0
    %88 = vmatprep.subr.bf16.mxu0 0
    %89 = vmatpush1.bf16.msra.mxu0 0
    %90 = vmatprep.subr.bf16.mxu0 0
    %91 = vmatpush1.bf16.msra.mxu0 0
    %92 = vmatprep.subr.bf16.mxu0 0
    %93 = vmatpush1.bf16.msra.mxu0 0
    %94 = vmatprep.subr.bf16.mxu0 0
    %95 = vmatpush1.bf16.msra.mxu0 0
    %96 = vmatprep.subr.bf16.mxu0 0
    %97 = vmatpush1.bf16.msra.mxu0 0
    %98 = vmatprep.subr.bf16.mxu0 0
    %99 = vmatpush1.bf16.msra.mxu0 0
    %100 = vmatprep.subr.bf16.mxu0 0
    %101 = vmatpush1.bf16.msra.mxu0 0
    %102 = vmatprep.subr.bf16.mxu0 0
    %103 = vmatpush1.bf16.msra.mxu0 0
    %104 = vmatprep.subr.bf16.mxu0 0
    %105 = vmatpush1.bf16.msra.mxu0 0
    %106 = vmatprep.subr.bf16.mxu0 0
    %107 = vmatpush1.bf16.msra.mxu0 0
    %108 = vmatprep.mubr.bf16.mxu0 0
    %109 = vmatmul.mubr.bf16.gmra.mrb[0].mxu0 %v71
    %v110 = vpop.f32.mrb[0].mxu0
    %v111 = vadd.f32 %v33, %v110
    %v112 = vpop.f32.mrb[0].mxu0
    %v113 = vpop.f32.mrb[0].mxu0
    %v114 = vadd.f32 %v33, %v113
    %v115 = vpop.f32.mrb[0].mxu0
    %116 = vmatprep.mubr.bf16.mxu0 0
    %117 = vmatmul.mubr.bf16.gmra.mrb[0].mxu0 %v74
    %v118 = vpop.f32.mrb[0].mxu0
    %v119 = vadd.f32 %v33, %v118
    %v120 = vpop.f32.mrb[0].mxu0
    %v121 = vpop.f32.mrb[0].mxu0
    %v122 = vadd.f32 %v33, %v121
    %v123 = vpop.f32.mrb[0].mxu0
    %124 = vdwg.mxu0
    %vm125 = vcmask 261120
    %126 = vst.msk [vmem:[#allocation2] sm:$0xff] %vm125, %v111
    %127 = vst.msk [vmem:[#allocation2 + $0x8] sm:$0xff] %vm125, %v114
    %128 = vst.msk [vmem:[#allocation2 + $0x10] sm:$0xff] %vm125, %v119
    %129 = vst.msk [vmem:[#allocation2 + $0x18] sm:$0xff] %vm125, %v122
    // Predicated region
    $region14: #{patch_embeddings.1} parent=1 // pred_check
      _
    $region15: #{patch_embeddings.1} parent=1 // pred_check_branch
      %131 = sbr.rel (0) target = $region17
    $region16: #{patch_embeddings.1} parent=1 // pred_region
      %s133 = ssub.s32 512, 512
      %134 = vsyncadd [#allocation3], %s133
      %s135 = sshll.u32 [#allocation2], 4
      %s136 = int_to_ptr.vmem [resolvable:$true] %s135
      %141 = dma.vmem_to_hbm [thread:$0]  %s136, 512, %s3, [#allocation3], 128, 128, 8
    $region17: #{patch_embeddings.1} parent=1 // pred_fallthru
      _
    // Predicated region
    $region18: #{patch_embeddings.1} parent=1 // pred_check
      _
    $region19: #{patch_embeddings.1} parent=1 // pred_check_branch
      %143 = sbr.rel (0) target = $region21
    $region20: #{patch_embeddings.1} parent=1 // pred_region
      %144 = dma.done [#allocation3], 512
    $region21: #{patch_embeddings.1} parent=1 // pred_fallthru
      _
    %145 = vsyncpa [#allocation3], 1

</llo_original>
